<compile_context>
chip_gen: v7x
topology: tpu7x:2x2x1
jax: 0.10.0
libtpu: 0.0.40
codegen_flags: <defaults>
</compile_context>

<pallas_src>
import jax
import jax.numpy as jnp
from jax.experimental import pallas as pl
from jax.experimental.pallas import tpu as pltpu

L = 4        # conv kernel size (self.L)
DOC1 = 8     # conv out channels (self.doc1)
HALO = 128   # in-register zero halo width: >= L and lane-aligned (multiple of 128)

MAX_BLOCK_B = 512               # rows per grid step; 512 keeps v5e scoped VMEM happy
VMEM_ROW_BYTES_FACTOR = 32      # ~VMEM bytes per block row per input column (in+out, 2-buf, temps)
VMEM_BUDGET = 12 * 1024 * 1024  # stay well under v5e's 16 MiB scoped-VMEM default


def _round_up(n, m):
    return ((n + m - 1) // m) * m


def _pick_block_b(B, T):
    """Rows per grid step: multiple of 8, >=2 steps when B > 8, VMEM-bounded."""
    bb = min(MAX_BLOCK_B, _round_up(B, 8))
    if bb >= B and B > 8:
        # Split into at least two blocks so v7x's two TensorCores both get work
        # and input DMA can overlap compute.
        bb = _round_up((B + 1) // 2, 8)
    max_bb = max(8, ((VMEM_BUDGET // (VMEM_ROW_BYTES_FACTOR * max(T, 1))) // 8) * 8)
    return max(8, min(bb, max_bb))


def cnn_kernel(x_ref, w_ref, b_ref, out_ref):
    """Fused 4-tap causal filter (Conv1d(1,DOC1,L) -> Linear(DOC1,1), weights pre-fused).

    x_ref   : (bb, T) VMEM  raw input rows (no padding anywhere)
    w_ref   : (L,)    SMEM  fused taps   w_eff[j] = sum_k wc[k, j] * wl[k]
    b_ref   : (1,)    SMEM  fused bias   b_eff    = bl + sum_k bc[k] * wl[k]
    out_ref : (bb, T) VMEM  out[:, t] = b_eff + sum_j w_eff[j] * x[:, t-L+j]  (t >= L)
                            out[:, t] = 0                                     (t <  L)
    """
    bb, T = x_ref.shape
    x = x_ref[...]                                       # single full-tile load

    # In-register left halo of zeros, concatenated on a lane-aligned (128) boundary,
    # so each tap below is a plain static slice of a VMEM value (no HBM pad copy).
    xz = jnp.concatenate([jnp.zeros((bb, HALO), jnp.float32), x], axis=1)  # (bb, HALO+T)

    acc = jnp.full((bb, T), b_ref[0], dtype=jnp.float32)
    for j in range(L):                                   # 4 unrolled VPU multiply-adds
        s = L - j                                        # causal look-back of tap j
        acc = acc + xz[:, HALO - s:HALO - s + T] * w_ref[j]

    out_ref[...] = acc                                   # one lane-dense store
    lz = min(L, T)
    out_ref[:, :lz] = jnp.zeros((bb, lz), jnp.float32)   # tiny masked store: first L cols -> 0


@jax.jit
def cnn_forward(x, wc, bc, wl, bl):
    """x: (B, T) f32; wc: (DOC1, L); bc: (DOC1,); wl: (DOC1,); bl: (1,). Returns (B, T)."""
    B, T = x.shape
    x = x.astype(jnp.float32)

    # Algebraic fusion of conv + linear (both are linear maps).
    wc32 = wc.astype(jnp.float32)
    wl32 = wl.astype(jnp.float32)
    w_eff = jnp.einsum("kl,k->l", wc32, wl32)                               # (L,)
    b_eff = jnp.reshape(bl.astype(jnp.float32)[0]
                        + jnp.dot(bc.astype(jnp.float32), wl32), (1,))      # (1,)

    bb = _pick_block_b(B, T)
    grid = (pl.cdiv(B, bb),)   # ragged last batch block handled by Pallas masking

    out = pl.pallas_call(
        cnn_kernel,
        out_shape=jax.ShapeDtypeStruct((B, T), jnp.float32),
        grid=grid,
        in_specs=[
            pl.BlockSpec((bb, T), lambda i: (i, 0)),                  # x (VMEM, batch-tiled)
            pl.BlockSpec(memory_space=pltpu.MemorySpace.SMEM),        # fused taps
            pl.BlockSpec(memory_space=pltpu.MemorySpace.SMEM),        # fused bias
        ],
        out_specs=pl.BlockSpec((bb, T), lambda i: (i, 0)),
        compiler_params=pltpu.CompilerParams(
            dimension_semantics=("parallel",),
        ),
    )(x, w_eff, b_eff)

    return out


def cnn_reference(x, wc, bc, wl, bl):
    """Pure-JAX reference mirroring the PyTorch forward (future=0), unfused weights."""
    B, T = x.shape
    M = T - L
    windows = jnp.stack([x[:, i:i + L] for i in range(M)], axis=1)   # (B, M, L)
    conv = jnp.einsum("bml,kl->bmk", windows, wc) + bc               # (B, M, DOC1)
    out = conv @ wl + bl[0]                                          # (B, M)
    return jnp.concatenate([jnp.zeros((B, L), jnp.float32), out], axis=1)


if __name__ == "__main__":
    key = jax.random.PRNGKey(0)
    k1, k2, k3, k4, k5 = jax.random.split(key, 5)

    B, T = 16, 40  # small shapes (original training data was (97, 999))

    # Deterministic synthetic parameters (shapes from nn.Conv1d(1,8,4), nn.Linear(8,1)).
    wc = 0.1 * jax.random.normal(k1, (DOC1, L), dtype=jnp.float32)   # Conv1d weight (8,1,4) squeezed
    bc = 0.1 * jax.random.normal(k2, (DOC1,), dtype=jnp.float32)     # Conv1d bias
    wl = 0.1 * jax.random.normal(k3, (DOC1,), dtype=jnp.float32)     # Linear weight (1,8) squeezed
    bl = 0.1 * jax.random.normal(k4, (1,), dtype=jnp.float32)        # Linear bias

    # Deterministic sin-wave input in the spirit of gen_data().
    offsets = jax.random.randint(k5, (B, 1), -80, 80).astype(jnp.float32)
    t = jnp.arange(T, dtype=jnp.float32)[None, :]
    x = jnp.sin((t + offsets) / 20.0).astype(jnp.float32)            # (B, T)

    out = cnn_forward(x, wc, bc, wl, bl)
    out = jax.block_until_ready(out)

    ref = cnn_reference(x, wc, bc, wl, bl)
    assert out.shape == (B, T)
    assert jnp.allclose(out, ref, atol=1e-5, rtol=1e-5), "Pallas kernel mismatch vs reference"

    print("KERNEL_OK")
</pallas_src>

<mosaic_0001>
module attributes {stable_mosaic.version = 11 : i64} {
  func.func @cnn_kernel(%arg0: i32, %arg1: memref<8x40xf32, #tpu.memory_space<vmem>>, %arg2: memref<4xf32, #tpu.memory_space<smem>>, %arg3: memref<1xf32, #tpu.memory_space<smem>>, %arg4: memref<8x40xf32, #tpu.memory_space<vmem>>) attributes {dimension_semantics = [#tpu.dimension_semantics<parallel>], iteration_bounds = array<i64: 2>, scalar_prefetch = 0 : i64, scratch_operands = 0 : i64, tpu.core_type = #tpu.core_type<tc>, window_params = [{transform_indices = @transform_0, window_bounds = array<i64: 8, 40>}, {transform_indices = @transform_1, window_bounds = array<i64: 4>}, {transform_indices = @transform_2, window_bounds = array<i64: 1>}, {transform_indices = @transform_3, window_bounds = array<i64: 8, 40>}]} {
    %c0 = arith.constant 0 : index
    %c0_0 = arith.constant 0 : index
    %0 = vector.load %arg1[%c0, %c0_0] : memref<8x40xf32, #tpu.memory_space<vmem>>, vector<8x40xf32>
    %cst = arith.constant 0.000000e+00 : f32
    %1 = vector.broadcast %cst : f32 to vector<8x128xf32>
    %2 = tpu.concatenate %1, %0 in 1 : vector<8x128xf32>, vector<8x40xf32> -> vector<8x168xf32>
    %c0_1 = arith.constant 0 : index
    %3 = memref.load %arg3[%c0_1] : memref<1xf32, #tpu.memory_space<smem>>
    %4 = vector.broadcast %3 : f32 to vector<8x40xf32>
    %5 = vector.extract_strided_slice %2 {offsets = [0, 124], sizes = [8, 40], strides = [1, 1]} : vector<8x168xf32> to vector<8x40xf32>
    %c0_2 = arith.constant 0 : index
    %6 = memref.load %arg2[%c0_2] : memref<4xf32, #tpu.memory_space<smem>>
    %7 = vector.broadcast %6 : f32 to vector<8x40xf32>
    %8 = arith.mulf %5, %7 : vector<8x40xf32>
    %9 = arith.addf %4, %8 : vector<8x40xf32>
    %10 = vector.extract_strided_slice %2 {offsets = [0, 125], sizes = [8, 40], strides = [1, 1]} : vector<8x168xf32> to vector<8x40xf32>
    %c1 = arith.constant 1 : index
    %11 = memref.load %arg2[%c1] : memref<4xf32, #tpu.memory_space<smem>>
    %12 = vector.broadcast %11 : f32 to vector<8x40xf32>
    %13 = arith.mulf %10, %12 : vector<8x40xf32>
    %14 = arith.addf %9, %13 : vector<8x40xf32>
    %15 = vector.extract_strided_slice %2 {offsets = [0, 126], sizes = [8, 40], strides = [1, 1]} : vector<8x168xf32> to vector<8x40xf32>
    %c2 = arith.constant 2 : index
    %16 = memref.load %arg2[%c2] : memref<4xf32, #tpu.memory_space<smem>>
    %17 = vector.broadcast %16 : f32 to vector<8x40xf32>
    %18 = arith.mulf %15, %17 : vector<8x40xf32>
    %19 = arith.addf %14, %18 : vector<8x40xf32>
    %20 = vector.extract_strided_slice %2 {offsets = [0, 127], sizes = [8, 40], strides = [1, 1]} : vector<8x168xf32> to vector<8x40xf32>
    %c3 = arith.constant 3 : index
    %21 = memref.load %arg2[%c3] : memref<4xf32, #tpu.memory_space<smem>>
    %22 = vector.broadcast %21 : f32 to vector<8x40xf32>
    %23 = arith.mulf %20, %22 : vector<8x40xf32>
    %24 = arith.addf %19, %23 : vector<8x40xf32>
    %c0_3 = arith.constant 0 : index
    %c0_4 = arith.constant 0 : index
    %25 = vector.load %arg4[%c0_3, %c0_4] : memref<8x40xf32, #tpu.memory_space<vmem>>, vector<8x40xf32>
    tpu.vector_store %arg4[%c0_3, %c0_4], %24 {strides = array<i32>} : memref<8x40xf32, #tpu.memory_space<vmem>>, vector<8x40xf32>,
    %cst_5 = arith.constant 0.000000e+00 : f32
    %26 = vector.broadcast %cst_5 : f32 to vector<8x4xf32>
    %c0_6 = arith.constant 0 : index
    %c0_7 = arith.constant 0 : index
    %27 = vector.load %arg4[%c0_6, %c0_7] : memref<8x40xf32, #tpu.memory_space<vmem>>, vector<8x4xf32>
    tpu.vector_store %arg4[%c0_6, %c0_7], %26 {strides = array<i32>} : memref<8x40xf32, #tpu.memory_space<vmem>>, vector<8x4xf32>,
    return
  }
  func.func @transform_0(%arg0: i32) -> (i32, i32) {
    %c0_i32 = arith.constant 0 : i32
    %c0_i32_0 = arith.constant 0 : i32
    return %arg0, %c0_i32 : i32, i32
  }
  func.func @transform_1(%arg0: i32) -> i32 {
    %c0_i32 = arith.constant 0 : i32
    %c0_i32_0 = arith.constant 0 : i32
    return %c0_i32 : i32
  }
  func.func @transform_2(%arg0: i32) -> i32 {
    %c0_i32 = arith.constant 0 : i32
    %c0_i32_0 = arith.constant 0 : i32
    return %c0_i32 : i32
  }
  func.func @transform_3(%arg0: i32) -> (i32, i32) {
    %c0_i32 = arith.constant 0 : i32
    %c0_i32_0 = arith.constant 0 : i32
    return %arg0, %c0_i32 : i32, i32
  }
}

</mosaic_0001>

<llo_original>
// kernel: cnn_forward.1
$region0: #{cnn_forward.1}
  #allocation0 [shape = 'u32[]', space=smem, size = 0x4, offset = 0x4, fixed_abs, tag = 'smem constant byte address 0x4 - core index']
  #allocation1 [shape = 'u32[144,128]{1,0:T(1,128)}', space=vmem, size = 0x12000, scoped, tag = 'internal scratch']
  #allocation2 [shape = 'f32[1]{0:T(128)S(6)}', space=smem, size = 0x200, scoped, tag = 'scoped memory for cnn_forward.1']
  %s0 = inlined_call_operand.vmem [shape: f32[16,40], index: 0, kind: input, shape index: {}]
  %s1 = inlined_call_operand.vmem [shape: f32[4], index: 1, kind: input, shape index: {}]
  %s2 = inlined_call_operand.<no memory space> [shape: f32[1], index: 2, kind: input, shape index: {}]
  %s3 = inlined_call_operand.hbm [shape: f32[16,40], index: 3, kind: output, shape index: {}]
  %s4 = sld [smem:[#allocation0]]
  $region49: #{cnn_forward.1} parent=0
    _
  %s6 = ssub.s32 1, %s4
  %s7 = scalar_select 0, %s6, %s4
  %8 = sst [smem:[#allocation2]] %s2
  $region1: #{cnn_forward.1} parent=0
    #allocation3 [shape = 'u8[512]{0}', space=smem, size = 0x200, scoped, tag = 'input window, operand 1, single buffered']
    #allocation4 [shape = 's32[2]{0}', space=sflag, size = 0x8, scoped, tag = 'scoped memory for cnn_forward.1']
    #allocation5 [shape = 's32[2]{0}', space=sflag, size = 0x8, scoped, tag = 'scoped memory for cnn_forward.1']
    #allocation6 [shape = 'u8[8192]{0}', space=vmem, size = 0x2000, scoped, tag = 'output window, operand 0']
    %9 = vsyncpa [#allocation5], 0
    %10 = vsyncpa [#allocation4], 0
    %s11 = scalar_lea.sflag [#allocation4], 1
    %12 = vsyncpa %s11, 0
    loop: start=0, step=1, limit=4
    $region2: #{cnn_forward.1} parent=1 // loop_pre_header
      _
    $region3: #{cnn_forward.1} parent=1 // loop_header
      %s14 = sphi 0, %s18
      %p15 = scmp.ge.s32.totalorder %s14, 4
      %s24 = sphi 0, %s26
      %s27 = sphi 0, %s24
      %s28 = sphi 0, %s27
      %s44 = sphi 0, %s28
      %s48 = sphi 0, %s48
      %s50 = sphi 0, %s48
      %s51 = sphi 0, %s50
      %s65 = sphi 0, %s51
      %s69 = sphi 0, %s69
      %s71 = sphi 0, %s69
      %s72 = sphi 0, %s71
      %s86 = sphi 0, %s72
      %s92 = sphi 0, %s94
      %s95 = sphi 0, %s92
      %s96 = sphi 0, %s95
      %s112 = sphi 0, %s96
    $region4: #{cnn_forward.1} parent=1 // loop_header_branch
      %17 = sbr.rel (%p15) target = $region8
    $region5: #{cnn_forward.1} parent=1 // loop_body
      %s19 = ssub.s32 %s14, 1
      %s20 = ssub.s32 %s14, 2
      %s21 = sadd.s32 %s14, 1
      %s22 = ssub.s32 %s14, %s21
      %p23 = scmp.eq.s32.totalorder %s22, 0
      %s25 = sadd.s32 %s24, 1
      %s26 = scalar_select %p23, %s24, %s25
      %p29 = pneg %p23
      %p30 = scmp.eq.s32.totalorder %s14, 1
      %p31 = por %p29, %p30
      %p32 = scmp.ne.s32.totalorder %s24, %s27
      %p33 = scmp.eq.s32.totalorder %s14, 0
      %p34 = por %p32, %p33
      %p35 = scmp.ne.s32.totalorder %s24, %s27
      %p36 = scmp.eq.s32.totalorder %s19, 1
      %p37 = por %p35, %p36
      %p38 = scmp.ne.s32.totalorder %s27, %s28
      %p39 = scmp.eq.s32.totalorder %s19, 0
      %p40 = por %p38, %p39
      %p41 = scmp.ne.s32.totalorder %s27, %s28
      %p42 = scmp.eq.s32.totalorder %s20, 1
      %p43 = por %p41, %p42
      %p45 = scmp.ne.s32.totalorder %s28, %s44
      %p46 = scmp.eq.s32.totalorder %s20, 0
      %p47 = por %p45, %p46
      %s49 = sadd.s32 %s48, 1
      %p52 = scmp.eq.s32.totalorder %s14, 1
      %p53 = scmp.ne.s32.totalorder %s48, %s50
      %p54 = scmp.eq.s32.totalorder %s14, 0
      %p55 = por %p53, %p54
      %p56 = scmp.ne.s32.totalorder %s48, %s50
      %p57 = scmp.eq.s32.totalorder %s19, 1
      %p58 = por %p56, %p57
      %p59 = scmp.ne.s32.totalorder %s50, %s51
      %p60 = scmp.eq.s32.totalorder %s19, 0
      %p61 = por %p59, %p60
      %p62 = scmp.ne.s32.totalorder %s50, %s51
      %p63 = scmp.eq.s32.totalorder %s20, 1
      %p64 = por %p62, %p63
      %p66 = scmp.ne.s32.totalorder %s51, %s65
      %p67 = scmp.eq.s32.totalorder %s20, 0
      %p68 = por %p66, %p67
      %s70 = sadd.s32 %s69, 1
      %p73 = scmp.eq.s32.totalorder %s14, 1
      %p74 = scmp.ne.s32.totalorder %s69, %s71
      %p75 = scmp.eq.s32.totalorder %s14, 0
      %p76 = por %p74, %p75
      %p77 = scmp.ne.s32.totalorder %s69, %s71
      %p78 = scmp.eq.s32.totalorder %s19, 1
      %p79 = por %p77, %p78
      %p80 = scmp.ne.s32.totalorder %s71, %s72
      %p81 = scmp.eq.s32.totalorder %s19, 0
      %p82 = por %p80, %p81
      %p83 = scmp.ne.s32.totalorder %s71, %s72
      %p84 = scmp.eq.s32.totalorder %s20, 1
      %p85 = por %p83, %p84
      %p87 = scmp.ne.s32.totalorder %s72, %s86
      %p88 = scmp.eq.s32.totalorder %s20, 0
      %p89 = por %p87, %p88
      %s90 = ssub.s32 %s14, %s21
      %p91 = scmp.eq.s32.totalorder %s90, 0
      %s93 = sadd.s32 %s92, 1
      %s94 = scalar_select %p91, %s92, %s93
      %p97 = pneg %p91
      %p98 = scmp.eq.s32.totalorder %s14, 1
      %p99 = por %p97, %p98
      %p100 = scmp.ne.s32.totalorder %s92, %s95
      %p101 = scmp.eq.s32.totalorder %s14, 0
      %p102 = por %p100, %p101
      %p103 = scmp.ne.s32.totalorder %s92, %s95
      %p104 = scmp.eq.s32.totalorder %s19, 1
      %p105 = por %p103, %p104
      %p106 = scmp.ne.s32.totalorder %s95, %s96
      %p107 = scmp.eq.s32.totalorder %s19, 0
      %p108 = por %p106, %p107
      %p109 = scmp.ne.s32.totalorder %s95, %s96
      %p110 = scmp.eq.s32.totalorder %s20, 1
      %p111 = por %p109, %p110
      %p113 = scmp.ne.s32.totalorder %s96, %s112
      %p114 = scmp.eq.s32.totalorder %s20, 0
      %p115 = por %p113, %p114
      %p116 = scmp.le.s32.totalorder 1, %s14
      %p117 = scmp.lt.s32.totalorder %s14, 3
      %p118 = pnand %p116, %p117
      %p119 = pneg %p118
      // Predicated region
      $region9: #{cnn_forward.1} parent=5 // pred_check
        _
      $region10: #{cnn_forward.1} parent=5 // pred_check_branch
        %121 = sbr.rel (%p118) target = $region12
      $region11: #{cnn_forward.1} parent=5 // pred_region
        %s122 = ssub.s32 %s14, 1
        // Predicated region
        $region13: #{cnn_forward.1} parent=11 // pred_check
          %p123 = pneg %p61
        $region14: #{cnn_forward.1} parent=11 // pred_check_branch
          %125 = sbr.rel (%p123) target = $region16
        $region15: #{cnn_forward.1} parent=11 // pred_region
          %s127 = ssub.s32 16, 16
          %128 = vsyncadd [#allocation5], %s127
          %s130 = sshll.u32 %s1, 4
          %s131 = int_to_ptr.vmem [resolvable:$true] %s130
          %133 = dma.vmem_to_smem %s131, 16, [#allocation3], [#allocation5]
        $region16: #{cnn_forward.1} parent=11 // pred_fallthru
          _
        // Predicated region
        $region17: #{cnn_forward.1} parent=11 // pred_check
          %p134 = pneg %p82
        $region18: #{cnn_forward.1} parent=11 // pred_check_branch
          %136 = sbr.rel (%p134) target = $region20
        $region19: #{cnn_forward.1} parent=11 // pred_region
          _
        $region20: #{cnn_forward.1} parent=11 // pred_fallthru
          _
      $region12: #{cnn_forward.1} parent=5 // pred_fallthru
        _
      %p137 = scmp.lt.s32.totalorder %s14, 2
      // Predicated region
      $region21: #{cnn_forward.1} parent=5 // pred_check
        %p138 = pneg %p137
      $region22: #{cnn_forward.1} parent=5 // pred_check_branch
        %140 = sbr.rel (%p138) target = $region24
      $region23: #{cnn_forward.1} parent=5 // pred_region
        // Predicated region
        $region25: #{cnn_forward.1} parent=23 // pred_check
          %p141 = pneg %p34
        $region26: #{cnn_forward.1} parent=23 // pred_check_branch
          %143 = sbr.rel (%p141) target = $region28
        $region27: #{cnn_forward.1} parent=23 // pred_region
          %p144 = scmp.lt.s32.totalorder %s14, 1
          %s145 = scalar_select %p144, %s14, 1
          %s146 = smul.addr %s145, 8
          %s147 = scalar_lea.vmem %s0, %s146
        $region28: #{cnn_forward.1} parent=23 // pred_fallthru
          _
      $region24: #{cnn_forward.1} parent=5 // pred_fallthru
        _
      %p148 = scmp.le.s32.totalorder 1, %s14
      %p149 = scmp.lt.s32.totalorder %s14, 3
      %p150 = pnand %p148, %p149
      %p151 = pneg %p150
      // Predicated region
      $region29: #{cnn_forward.1} parent=5 // pred_check
        _
      $region30: #{cnn_forward.1} parent=5 // pred_check_branch
        %153 = sbr.rel (%p150) target = $region32
      $region31: #{cnn_forward.1} parent=5 // pred_region
        %s154 = ssub.s32 %s14, 1
        // Predicated region
        $region33: #{cnn_forward.1} parent=31 // pred_check
          %p155 = pneg %p61
        $region34: #{cnn_forward.1} parent=31 // pred_check_branch
          %157 = sbr.rel (%p155) target = $region36
        $region35: #{cnn_forward.1} parent=31 // pred_region
          %158 = dma.done [#allocation5], 16
        $region36: #{cnn_forward.1} parent=31 // pred_fallthru
          _
        %159 = sfence
        %p160 = scmp.lt.s32.totalorder %s19, 1
        %s161 = scalar_select %p160, %s19, 1
        %s162 = smul.addr %s161, 8
        %s163 = scalar_lea.vmem %s0, %s162
        %p164 = pneg %p40
        %p165 = pneg %p37
        %p166 = pneg %p61
        %p167 = pneg %p58
        %p168 = pneg %p82
        %p169 = pneg %p79
        %p170 = pneg %p108
        %p171 = pneg %p105
        %s172 = sand.u32 %s95, 1
        %s173 = scalar_lea.sflag [#allocation4], %s172
        %s174 = sand.u32 %s95, 1
        %s175 = smul.addr %s174, 8
        %s176 = scalar_lea.vmem [#allocation6], %s175
        %p177 = scmp.lt.s32.totalorder %s19, 1
        %s178 = scalar_select %p177, %s19, 1
        %s179 = smul.addr %s178, 8
        %s180 = scalar_lea.vmem %s0, %s179
        %v181 = vld [vmem:[%s180] sm:$0xff]
        %s182 = sld [smem:[#allocation2]]
        %v183 = vstv %s182
        %s184 = sld [smem:[#allocation3]]
        %v185 = vstv %s184
        %v186 = vmul.f32 %v185, 0.0
        %v187 = vmul.f32 %v181, %v185
        %v188 = vadd.f32 %v183, %v186
        %v189 = vadd.f32 %v183, %v187
        %s190 = sld [smem:[#allocation3 + $0x1]]
        %v191 = vstv %s190
        %v192 = vmul.f32 %v191, 0.0
        %v193 = vmul.f32 %v181, %v191
        %196 = vrot.lane.b32.xlu0 %v192, 127
        %v197 = vpop.permute.xlu0 %196
        %198 = vrot.lane.b32.xlu0 %v193, 127
        %v199 = vpop.permute.xlu0 %198
        %vm200 = vcmask 1039360
        %v201 = vsel %vm200, %v197, %v199
        %v204 = vadd.f32 %v188, %v201
        %v205 = vadd.f32 %v189, %v199
        %s206 = sld [smem:[#allocation3 + $0x2]]
        %v207 = vstv %s206
        %v208 = vmul.f32 %v207, 0.0
        %v209 = vmul.f32 %v181, %v207
        %212 = vrot.lane.b32.xlu0 %v208, 126
        %v213 = vpop.permute.xlu0 %212
        %214 = vrot.lane.b32.xlu0 %v209, 126
        %v215 = vpop.permute.xlu0 %214
        %vm216 = vcmask 1031168
        %v217 = vsel %vm216, %v213, %v215
        %v220 = vadd.f32 %v204, %v217
        %v221 = vadd.f32 %v205, %v215
        %s222 = sld [smem:[#allocation3 + $0x3]]
        %v223 = vstv %s222
        %v224 = vmul.f32 %v223, 0.0
        %v225 = vmul.f32 %v181, %v223
        %228 = vrot.lane.b32.xlu0 %v224, 125
        %v229 = vpop.permute.xlu0 %228
        %230 = vrot.lane.b32.xlu0 %v225, 125
        %v231 = vpop.permute.xlu0 %230
        %vm232 = vcmask 1022976
        %v233 = vsel %vm232, %v229, %v231
        %v236 = vadd.f32 %v220, %v233
        %v237 = vadd.f32 %v221, %v231
        %240 = vrot.lane.b32.xlu0 %v236, 4
        %v241 = vpop.permute.xlu0 %240
        %242 = vrot.lane.b32.xlu0 %v237, 4
        %v243 = vpop.permute.xlu0 %242
        %vm244 = vcmask 31744
        %v245 = vsel %vm244, %v241, %v243
        %vm247 = vcmask 326656
        %248 = vst.msk [vmem:[%s176] sm:$0xff] %vm247, %v245
        %249 = vst.msk [vmem:[%s176] sm:$0xff] %vm244, 0.0
        %s250 = sand.u32 %s95, 1
        %s251 = scalar_lea.sflag [#allocation4], %s250
        %s252 = sand.u32 %s95, 1
        %s253 = smul.addr %s252, 8
        %s254 = scalar_lea.vmem [#allocation6], %s253
        // Predicated region
        $region37: #{cnn_forward.1} parent=31 // pred_check
          %p255 = pneg %p105
        $region38: #{cnn_forward.1} parent=31 // pred_check_branch
          %257 = sbr.rel (%p255) target = $region40
        $region39: #{cnn_forward.1} parent=31 // pred_region
          %s259 = ssub.s32 128, 128
          %260 = vsyncadd %s251, %s259
          %s261 = smul.addr %s19, 128
          %s262 = scalar_lea.hbm %s3, %s261
          %s264 = sshll.u32 %s254, 4
          %s265 = int_to_ptr.vmem [resolvable:$true] %s264
          %267 = dma.vmem_to_hbm [thread:$0]  %s265, 128, %s262, %s251
        $region40: #{cnn_forward.1} parent=31 // pred_fallthru
          _
      $region32: #{cnn_forward.1} parent=5 // pred_fallthru
        _
      %p268 = scmp.le.s32.totalorder 2, %s14
      // Predicated region
      $region41: #{cnn_forward.1} parent=5 // pred_check
        %p269 = pneg %p268
      $region42: #{cnn_forward.1} parent=5 // pred_check_branch
        %271 = sbr.rel (%p269) target = $region44
      $region43: #{cnn_forward.1} parent=5 // pred_region
        %s272 = ssub.s32 %s14, 2
        // Predicated region
        $region45: #{cnn_forward.1} parent=43 // pred_check
          %p273 = pneg %p111
        $region46: #{cnn_forward.1} parent=43 // pred_check_branch
          %275 = sbr.rel (%p273) target = $region48
        $region47: #{cnn_forward.1} parent=43 // pred_region
          %s276 = sand.u32 %s96, 1
          %s277 = scalar_lea.sflag [#allocation4], %s276
          %s278 = sand.u32 %s96, 1
          %s279 = smul.addr %s278, 8
          %s280 = scalar_lea.vmem [#allocation6], %s279
          %281 = dma.done %s277, 128
        $region48: #{cnn_forward.1} parent=43 // pred_fallthru
          _
      $region44: #{cnn_forward.1} parent=5 // pred_fallthru
        _
    $region6: #{cnn_forward.1} parent=1 // loop_footer
      %s18 = sadd.s32 1, %s14
    $region7: #{cnn_forward.1} parent=1 // loop_footer_branch
      %13 = sbr.rel target = $region3
    $region8: #{cnn_forward.1} parent=1 // loop_exit
      _
    %282 = vsyncpa [#allocation4], 1
    %s283 = scalar_lea.sflag [#allocation4], 1
    %284 = vsyncpa %s283, 1
    %285 = vsyncpa [#allocation5], 1
    %s286 = scalar_lea.sflag [#allocation5], 1
    %287 = vsyncpa %s286, 1

</llo_original>
